<compile_context>
chip_gen: v7x
topology: tpu7x:2x2x1
jax: 0.10.0
libtpu: 0.0.40
codegen_flags: <defaults>
</compile_context>

<pallas_src>
import functools

import jax
import jax.numpy as jnp
from jax.experimental import pallas as pl
from jax.experimental.pallas import tpu as pltpu

_MIB = 1024 * 1024


def _weighted_ce_partial(x, y_col, cls, valid, weight):
    """weight * sum over valid rows of (logsumexp(x) - x[y]) for one (T, C) tile."""
    # Target-logit gather via one-hot select; exact in any float dtype (one nonzero per row).
    one_hot = cls == y_col                                               # (T, C) bool
    tgt = jnp.sum(jnp.where(one_hot, x, 0.0), axis=-1,
                  keepdims=True).astype(jnp.float32)                     # (T, 1)
    # Row max in the native dtype (exact); upcast only for the exp/log/sum chain.
    m = jnp.max(x, axis=-1, keepdims=True)                               # (T, 1)
    xs = x.astype(jnp.float32) - m.astype(jnp.float32)                   # (T, C) f32
    lse = m.astype(jnp.float32) + jnp.log(
        jnp.sum(jnp.exp(xs), axis=-1, keepdims=True))                    # (T, 1)
    per_example = lse - tgt                                              # (T, 1) == -log p(y)
    if valid is not None:
        # Select semantics: NaN/garbage in padded rows cannot leak through this mask,
        # so no full-tile x-level pre-mask is needed.
        per_example = jnp.where(valid, per_example, 0.0)
    return weight * jnp.sum(per_example)


def _combined_loss_kernel(x1_ref, y1_ref, x2_ref, y2_ref, x3_ref, y3_ref,
                          out_ref, *, n_rows, tile_n):
    c = x1_ref.shape[-1]
    # Hoisted: build the (T, C) class iota exactly once and share across the 3 CE terms.
    cls = jax.lax.broadcasted_iota(jnp.int32, (tile_n, c), 1)
    if n_rows % tile_n == 0:
        valid = None                                                     # aligned: no masking
    else:
        rows = (pl.program_id(0) * tile_n
                + jax.lax.broadcasted_iota(jnp.int32, (tile_n, 1), 0))
        valid = rows < n_rows                                            # (T, 1) bool
    s = (_weighted_ce_partial(x1_ref[...], y1_ref[...], cls, valid, 0.5)
         + _weighted_ce_partial(x2_ref[...], y2_ref[...], cls, valid, 0.25)
         + _weighted_ce_partial(x3_ref[...], y3_ref[...], cls, valid, 0.25))
    # lane-dense per-tile partial (broadcast scalar across 128 lanes)
    out_ref[...] = jnp.broadcast_to(s, out_ref.shape)


def _vmem_plan():
    """Return (vmem_limit_bytes, block+temporary budget) sized per TPU generation."""
    try:
        cap = pltpu.get_tpu_info().vmem_capacity_bytes
    except Exception:
        cap = None
    if cap is not None and cap >= 100 * _MIB:     # v5e / v6e: 128 MiB physical VMEM
        return 64 * _MIB, 48 * _MIB
    # v7x (64 MiB per TC) or unknown: conservative; leaves ~16 MiB for Mosaic scratch.
    return 48 * _MIB, 32 * _MIB


def _choose_tile_n(n, c, itemsize, budget_bytes):
    c_pad = -(-c // 128) * 128                    # lane-padded VMEM width of a logits block
    # Per-row VMEM: 3 logits blocks x 2 pipeline buffers (lane padded)
    #             + 3 int32 target columns x 2 buffers (each pads to 128 lanes)
    #             + ~4 f32 tile-sized body temporaries (upcast/sub, exp, one-hot select, ...).
    vmem_per_row = 3 * 2 * c_pad * itemsize + 3 * 2 * 128 * 4 + 4 * c_pad * 4
    t_vmem = budget_bytes // max(vmem_per_row, 1)
    # Amortize ~0.35 us per grid step: target ~3 MiB of logits HBM traffic per step.
    t_dma = max(1, (3 * _MIB) // max(3 * c * itemsize, 1))
    sub = max(8, 32 // max(itemsize, 1))          # sublane multiple: 8 f32 / 16 bf16 / 32 int8
    tile = min(t_vmem, t_dma)
    if n >= sub:
        tile = min(tile, (n // sub) * sub)        # never bigger than N (avoid padded waste)
    tile = max(sub, (tile // sub) * sub)
    return int(tile)


def combined_loss(x1, x2, x3, y1, y2, y3, reduction="mean"):
    assert reduction == "mean"
    N, C = x1.shape
    y1 = y1.astype(jnp.int32).reshape(N, 1)
    y2 = y2.astype(jnp.int32).reshape(N, 1)
    y3 = y3.astype(jnp.int32).reshape(N, 1)

    itemsize = jnp.dtype(x1.dtype).itemsize
    vmem_limit, budget = _vmem_plan()
    tile_n = _choose_tile_n(N, C, itemsize, budget)
    num_tiles = pl.cdiv(N, tile_n)

    kernel = functools.partial(_combined_loss_kernel, n_rows=N, tile_n=tile_n)
    logits_spec = pl.BlockSpec((tile_n, C), lambda i: (i, 0))
    target_spec = pl.BlockSpec((tile_n, 1), lambda i: (i, 0))

    cost = pl.CostEstimate(
        flops=int(8 * 3 * N * C),
        transcendentals=int(3 * N * C + 3 * N),
        bytes_accessed=int(3 * N * C * itemsize + 3 * N * 4 + num_tiles * 512),
    )

    partials = pl.pallas_call(
        kernel,
        out_shape=jax.ShapeDtypeStruct((num_tiles, 1, 128), jnp.float32),
        grid=(num_tiles,),
        in_specs=[logits_spec, target_spec,
                  logits_spec, target_spec,
                  logits_spec, target_spec],
        out_specs=pl.BlockSpec((1, 1, 128), lambda i: (i, 0, 0)),
        compiler_params=pltpu.CompilerParams(
            dimension_semantics=("parallel",),      # no carried state -> megacore-friendly
            vmem_limit_bytes=vmem_limit,
        ),
        cost_estimate=cost,
    )(x1, y1, x2, y2, x3, y3)

    # tiny final reduction (num_tiles scalars) in plain JAX; all CE terms share the same N.
    return jnp.sum(partials[:, 0, 0]) / jnp.float32(N)


if __name__ == "__main__":
    def ce_ref(x, y):
        logp = jax.nn.log_softmax(x.astype(jnp.float32), axis=-1)
        return -jnp.mean(jnp.take_along_axis(logp, y[:, None], axis=-1))

    def ref_combined(x1, x2, x3, y1, y2, y3):
        return 0.5 * ce_ref(x1, y1) + 0.25 * ce_ref(x2, y2) + 0.25 * ce_ref(x3, y3)

    # Case 1: small aligned shapes (single tile, no row mask).
    key = jax.random.PRNGKey(0)
    N, C = 8, 32
    k = jax.random.split(key, 6)
    x1 = jax.random.normal(k[0], (N, C), dtype=jnp.float32)
    x2 = jax.random.normal(k[1], (N, C), dtype=jnp.float32)
    x3 = jax.random.normal(k[2], (N, C), dtype=jnp.float32)
    y1 = jax.random.randint(k[3], (N,), 0, C, dtype=jnp.int32)
    y2 = jax.random.randint(k[4], (N,), 0, C, dtype=jnp.int32)
    y3 = jax.random.randint(k[5], (N,), 0, C, dtype=jnp.int32)

    loss = combined_loss(x1, x2, x3, y1, y2, y3)
    jax.block_until_ready(loss)
    ref = ref_combined(x1, x2, x3, y1, y2, y3)
    assert jnp.allclose(loss, ref, atol=1e-5, rtol=1e-5), (loss, ref)

    # Case 2: unaligned N (exercises the multi-tile grid + partial-tile row mask).
    N2, C2 = 20, 40
    k2 = jax.random.split(jax.random.PRNGKey(1), 6)
    a1 = jax.random.normal(k2[0], (N2, C2), dtype=jnp.float32)
    a2 = jax.random.normal(k2[1], (N2, C2), dtype=jnp.float32)
    a3 = jax.random.normal(k2[2], (N2, C2), dtype=jnp.float32)
    b1 = jax.random.randint(k2[3], (N2,), 0, C2, dtype=jnp.int32)
    b2 = jax.random.randint(k2[4], (N2,), 0, C2, dtype=jnp.int32)
    b3 = jax.random.randint(k2[5], (N2,), 0, C2, dtype=jnp.int32)

    loss2 = combined_loss(a1, a2, a3, b1, b2, b3)
    jax.block_until_ready(loss2)
    ref2 = ref_combined(a1, a2, a3, b1, b2, b3)
    assert jnp.allclose(loss2, ref2, atol=1e-5, rtol=1e-5), (loss2, ref2)

    print("KERNEL_OK")
</pallas_src>

<mosaic_0001>
module attributes {stable_mosaic.version = 11 : i64} {
  func.func @_combined_loss_kernel(%arg0: i32, %arg1: memref<8x32xf32, #tpu.memory_space<vmem>>, %arg2: memref<8x1xi32, #tpu.memory_space<vmem>>, %arg3: memref<8x32xf32, #tpu.memory_space<vmem>>, %arg4: memref<8x1xi32, #tpu.memory_space<vmem>>, %arg5: memref<8x32xf32, #tpu.memory_space<vmem>>, %arg6: memref<8x1xi32, #tpu.memory_space<vmem>>, %arg7: memref<1x1x128xf32, #tpu.memory_space<vmem>>) attributes {dimension_semantics = [#tpu.dimension_semantics<parallel>], iteration_bounds = array<i64: 1>, scalar_prefetch = 0 : i64, scratch_operands = 0 : i64, tpu.core_type = #tpu.core_type<tc>, window_params = [{transform_indices = @transform_0, window_bounds = array<i64: 8, 32>}, {transform_indices = @transform_1, window_bounds = array<i64: 8, 1>}, {transform_indices = @transform_2, window_bounds = array<i64: 8, 32>}, {transform_indices = @transform_3, window_bounds = array<i64: 8, 1>}, {transform_indices = @transform_4, window_bounds = array<i64: 8, 32>}, {transform_indices = @transform_5, window_bounds = array<i64: 8, 1>}, {transform_indices = @transform_6, window_bounds = array<i64: 1, 1, 128>}]} {
    %0 = tpu.iota {dimensions = array<i32: 1>} : vector<8x32xi32>
    %c0 = arith.constant 0 : index
    %c0_0 = arith.constant 0 : index
    %1 = vector.load %arg1[%c0, %c0_0] : memref<8x32xf32, #tpu.memory_space<vmem>>, vector<8x32xf32>
    %c0_1 = arith.constant 0 : index
    %c0_2 = arith.constant 0 : index
    %2 = vector.load %arg2[%c0_1, %c0_2] : memref<8x1xi32, #tpu.memory_space<vmem>>, vector<8x1xi32>
    %3 = vector.broadcast %2 : vector<8x1xi32> to vector<8x32xi32>
    %4 = arith.cmpi eq, %0, %3 : vector<8x32xi32>
    %cst = arith.constant 0.000000e+00 : f32
    %5 = vector.broadcast %cst : f32 to vector<8x32xf32>
    %6 = arith.select %4, %1, %5 : vector<8x32xi1>, vector<8x32xf32>
    %cst_3 = arith.constant dense<0.000000e+00> : vector<8xf32>
    %7 = vector.multi_reduction <add>, %6, %cst_3 [1] : vector<8x32xf32> to vector<8xf32>
    %8 = vector.shape_cast %7 : vector<8xf32> to vector<8x1xf32>
    %cst_4 = arith.constant dense<0xFF800000> : vector<8xf32>
    %9 = vector.multi_reduction <maximumf>, %1, %cst_4 [1] : vector<8x32xf32> to vector<8xf32>
    %10 = vector.shape_cast %9 : vector<8xf32> to vector<8x1xf32>
    %11 = vector.broadcast %10 : vector<8x1xf32> to vector<8x32xf32>
    %12 = arith.subf %1, %11 : vector<8x32xf32>
    %13 = math.exp %12 : vector<8x32xf32>
    %cst_5 = arith.constant dense<0.000000e+00> : vector<8xf32>
    %14 = vector.multi_reduction <add>, %13, %cst_5 [1] : vector<8x32xf32> to vector<8xf32>
    %15 = vector.shape_cast %14 : vector<8xf32> to vector<8x1xf32>
    %16 = math.log %15 : vector<8x1xf32>
    %17 = arith.addf %10, %16 : vector<8x1xf32>
    %18 = arith.subf %17, %8 : vector<8x1xf32>
    %19 = vector.shape_cast %18 : vector<8x1xf32> to vector<1x8x1xf32>
    %cst_6 = arith.constant dense<0.000000e+00> : vector<1xf32>
    %20 = vector.multi_reduction <add>, %19, %cst_6 [1, 2] : vector<1x8x1xf32> to vector<1xf32>
    %21 = vector.shape_cast %20 : vector<1xf32> to vector<1x1x1xf32>
    %22 = vector.extract %21[0, 0, 0] : f32 from vector<1x1x1xf32>
    %cst_7 = arith.constant 5.000000e-01 : f32
    %23 = arith.mulf %cst_7, %22 : f32
    %c0_8 = arith.constant 0 : index
    %c0_9 = arith.constant 0 : index
    %24 = vector.load %arg3[%c0_8, %c0_9] : memref<8x32xf32, #tpu.memory_space<vmem>>, vector<8x32xf32>
    %c0_10 = arith.constant 0 : index
    %c0_11 = arith.constant 0 : index
    %25 = vector.load %arg4[%c0_10, %c0_11] : memref<8x1xi32, #tpu.memory_space<vmem>>, vector<8x1xi32>
    %26 = vector.broadcast %25 : vector<8x1xi32> to vector<8x32xi32>
    %27 = arith.cmpi eq, %0, %26 : vector<8x32xi32>
    %cst_12 = arith.constant 0.000000e+00 : f32
    %28 = vector.broadcast %cst_12 : f32 to vector<8x32xf32>
    %29 = arith.select %27, %24, %28 : vector<8x32xi1>, vector<8x32xf32>
    %cst_13 = arith.constant dense<0.000000e+00> : vector<8xf32>
    %30 = vector.multi_reduction <add>, %29, %cst_13 [1] : vector<8x32xf32> to vector<8xf32>
    %31 = vector.shape_cast %30 : vector<8xf32> to vector<8x1xf32>
    %cst_14 = arith.constant dense<0xFF800000> : vector<8xf32>
    %32 = vector.multi_reduction <maximumf>, %24, %cst_14 [1] : vector<8x32xf32> to vector<8xf32>
    %33 = vector.shape_cast %32 : vector<8xf32> to vector<8x1xf32>
    %34 = vector.broadcast %33 : vector<8x1xf32> to vector<8x32xf32>
    %35 = arith.subf %24, %34 : vector<8x32xf32>
    %36 = math.exp %35 : vector<8x32xf32>
    %cst_15 = arith.constant dense<0.000000e+00> : vector<8xf32>
    %37 = vector.multi_reduction <add>, %36, %cst_15 [1] : vector<8x32xf32> to vector<8xf32>
    %38 = vector.shape_cast %37 : vector<8xf32> to vector<8x1xf32>
    %39 = math.log %38 : vector<8x1xf32>
    %40 = arith.addf %33, %39 : vector<8x1xf32>
    %41 = arith.subf %40, %31 : vector<8x1xf32>
    %42 = vector.shape_cast %41 : vector<8x1xf32> to vector<1x8x1xf32>
    %cst_16 = arith.constant dense<0.000000e+00> : vector<1xf32>
    %43 = vector.multi_reduction <add>, %42, %cst_16 [1, 2] : vector<1x8x1xf32> to vector<1xf32>
    %44 = vector.shape_cast %43 : vector<1xf32> to vector<1x1x1xf32>
    %45 = vector.extract %44[0, 0, 0] : f32 from vector<1x1x1xf32>
    %cst_17 = arith.constant 2.500000e-01 : f32
    %46 = arith.mulf %cst_17, %45 : f32
    %47 = arith.addf %23, %46 : f32
    %c0_18 = arith.constant 0 : index
    %c0_19 = arith.constant 0 : index
    %48 = vector.load %arg5[%c0_18, %c0_19] : memref<8x32xf32, #tpu.memory_space<vmem>>, vector<8x32xf32>
    %c0_20 = arith.constant 0 : index
    %c0_21 = arith.constant 0 : index
    %49 = vector.load %arg6[%c0_20, %c0_21] : memref<8x1xi32, #tpu.memory_space<vmem>>, vector<8x1xi32>
    %50 = vector.broadcast %49 : vector<8x1xi32> to vector<8x32xi32>
    %51 = arith.cmpi eq, %0, %50 : vector<8x32xi32>
    %cst_22 = arith.constant 0.000000e+00 : f32
    %52 = vector.broadcast %cst_22 : f32 to vector<8x32xf32>
    %53 = arith.select %51, %48, %52 : vector<8x32xi1>, vector<8x32xf32>
    %cst_23 = arith.constant dense<0.000000e+00> : vector<8xf32>
    %54 = vector.multi_reduction <add>, %53, %cst_23 [1] : vector<8x32xf32> to vector<8xf32>
    %55 = vector.shape_cast %54 : vector<8xf32> to vector<8x1xf32>
    %cst_24 = arith.constant dense<0xFF800000> : vector<8xf32>
    %56 = vector.multi_reduction <maximumf>, %48, %cst_24 [1] : vector<8x32xf32> to vector<8xf32>
    %57 = vector.shape_cast %56 : vector<8xf32> to vector<8x1xf32>
    %58 = vector.broadcast %57 : vector<8x1xf32> to vector<8x32xf32>
    %59 = arith.subf %48, %58 : vector<8x32xf32>
    %60 = math.exp %59 : vector<8x32xf32>
    %cst_25 = arith.constant dense<0.000000e+00> : vector<8xf32>
    %61 = vector.multi_reduction <add>, %60, %cst_25 [1] : vector<8x32xf32> to vector<8xf32>
    %62 = vector.shape_cast %61 : vector<8xf32> to vector<8x1xf32>
    %63 = math.log %62 : vector<8x1xf32>
    %64 = arith.addf %57, %63 : vector<8x1xf32>
    %65 = arith.subf %64, %55 : vector<8x1xf32>
    %66 = vector.shape_cast %65 : vector<8x1xf32> to vector<1x8x1xf32>
    %cst_26 = arith.constant dense<0.000000e+00> : vector<1xf32>
    %67 = vector.multi_reduction <add>, %66, %cst_26 [1, 2] : vector<1x8x1xf32> to vector<1xf32>
    %68 = vector.shape_cast %67 : vector<1xf32> to vector<1x1x1xf32>
    %69 = vector.extract %68[0, 0, 0] : f32 from vector<1x1x1xf32>
    %cst_27 = arith.constant 2.500000e-01 : f32
    %70 = arith.mulf %cst_27, %69 : f32
    %71 = arith.addf %47, %70 : f32
    %72 = vector.broadcast %71 : f32 to vector<1x1x128xf32>
    %c0_28 = arith.constant 0 : index
    %c0_29 = arith.constant 0 : index
    %c0_30 = arith.constant 0 : index
    %73 = vector.load %arg7[%c0_28, %c0_29, %c0_30] : memref<1x1x128xf32, #tpu.memory_space<vmem>>, vector<1x1x128xf32>
    tpu.vector_store %arg7[%c0_28, %c0_29, %c0_30], %72 {strides = array<i32>} : memref<1x1x128xf32, #tpu.memory_space<vmem>>, vector<1x1x128xf32>,
    return
  }
  func.func @transform_0(%arg0: i32) -> (i32, i32) {
    %c0_i32 = arith.constant 0 : i32
    %c0_i32_0 = arith.constant 0 : i32
    return %arg0, %c0_i32 : i32, i32
  }
  func.func @transform_1(%arg0: i32) -> (i32, i32) {
    %c0_i32 = arith.constant 0 : i32
    %c0_i32_0 = arith.constant 0 : i32
    return %arg0, %c0_i32 : i32, i32
  }
  func.func @transform_2(%arg0: i32) -> (i32, i32) {
    %c0_i32 = arith.constant 0 : i32
    %c0_i32_0 = arith.constant 0 : i32
    return %arg0, %c0_i32 : i32, i32
  }
  func.func @transform_3(%arg0: i32) -> (i32, i32) {
    %c0_i32 = arith.constant 0 : i32
    %c0_i32_0 = arith.constant 0 : i32
    return %arg0, %c0_i32 : i32, i32
  }
  func.func @transform_4(%arg0: i32) -> (i32, i32) {
    %c0_i32 = arith.constant 0 : i32
    %c0_i32_0 = arith.constant 0 : i32
    return %arg0, %c0_i32 : i32, i32
  }
  func.func @transform_5(%arg0: i32) -> (i32, i32) {
    %c0_i32 = arith.constant 0 : i32
    %c0_i32_0 = arith.constant 0 : i32
    return %arg0, %c0_i32 : i32, i32
  }
  func.func @transform_6(%arg0: i32) -> (i32, i32, i32) {
    %c0_i32 = arith.constant 0 : i32
    %c0_i32_0 = arith.constant 0 : i32
    %c0_i32_1 = arith.constant 0 : i32
    return %arg0, %c0_i32, %c0_i32_0 : i32, i32, i32
  }
}

</mosaic_0001>

<llo_original>
// kernel: tpu_custom_call.1
$region0: #{tpu_custom_call.1}
  #allocation0 [shape = 'u32[]', space=smem, size = 0x4, offset = 0x4, fixed_abs, tag = 'smem constant byte address 0x4 - core index']
  #allocation1 [shape = 'u32[144,128]{1,0:T(1,128)}', space=vmem, size = 0x12000, scoped, tag = 'internal scratch']
  %s0 = inlined_call_operand.vmem [shape: f32[8,32], index: 0, kind: input, shape index: {}]
  %s1 = inlined_call_operand.vmem [shape: s32[8,1], index: 1, kind: input, shape index: {}]
  %s2 = inlined_call_operand.vmem [shape: f32[8,32], index: 2, kind: input, shape index: {}]
  %s3 = inlined_call_operand.vmem [shape: s32[8,1], index: 3, kind: input, shape index: {}]
  %s4 = inlined_call_operand.vmem [shape: f32[8,32], index: 4, kind: input, shape index: {}]
  %s5 = inlined_call_operand.vmem [shape: s32[8,1], index: 5, kind: input, shape index: {}]
  %s6 = inlined_call_operand.hbm [shape: f32[1,1,128], index: 6, kind: output, shape index: {}]
  %s7 = sld [smem:[#allocation0]]
  $region34: #{tpu_custom_call.1} parent=0
    _
  %s9 = ssub.s32 1, %s7
  %s10 = scalar_select 0, %s9, %s7
  $region1: #{tpu_custom_call.1} parent=0
    #allocation2 [shape = 'u8[512]{0}', space=vmem, size = 0x400, scoped, tag = 'output window, operand 0, single buffered']
    #allocation3 [shape = 's32[1]{0}', space=sflag, size = 0x4, scoped, tag = 'scoped memory for tpu_custom_call.1']
    %11 = vsyncpa [#allocation3], 0
    // Predicated region
    $region2: #{tpu_custom_call.1} parent=1 // pred_check
      _
    $region3: #{tpu_custom_call.1} parent=1 // pred_check_branch
      %13 = sbr.rel (0) target = $region5
    $region4: #{tpu_custom_call.1} parent=1 // pred_region
      _
    $region5: #{tpu_custom_call.1} parent=1 // pred_fallthru
      _
    // Predicated region
    $region6: #{tpu_custom_call.1} parent=1 // pred_check
      _
    $region7: #{tpu_custom_call.1} parent=1 // pred_check_branch
      %15 = sbr.rel (0) target = $region9
    $region8: #{tpu_custom_call.1} parent=1 // pred_region
      _
    $region9: #{tpu_custom_call.1} parent=1 // pred_fallthru
      _
    // Predicated region
    $region10: #{tpu_custom_call.1} parent=1 // pred_check
      _
    $region11: #{tpu_custom_call.1} parent=1 // pred_check_branch
      %17 = sbr.rel (0) target = $region13
    $region12: #{tpu_custom_call.1} parent=1 // pred_region
      _
    $region13: #{tpu_custom_call.1} parent=1 // pred_fallthru
      _
    // Predicated region
    $region14: #{tpu_custom_call.1} parent=1 // pred_check
      _
    $region15: #{tpu_custom_call.1} parent=1 // pred_check_branch
      %19 = sbr.rel (0) target = $region17
    $region16: #{tpu_custom_call.1} parent=1 // pred_region
      _
    $region17: #{tpu_custom_call.1} parent=1 // pred_fallthru
      _
    // Predicated region
    $region18: #{tpu_custom_call.1} parent=1 // pred_check
      _
    $region19: #{tpu_custom_call.1} parent=1 // pred_check_branch
      %21 = sbr.rel (0) target = $region21
    $region20: #{tpu_custom_call.1} parent=1 // pred_region
      _
    $region21: #{tpu_custom_call.1} parent=1 // pred_fallthru
      _
    // Predicated region
    $region22: #{tpu_custom_call.1} parent=1 // pred_check
      _
    $region23: #{tpu_custom_call.1} parent=1 // pred_check_branch
      %23 = sbr.rel (0) target = $region25
    $region24: #{tpu_custom_call.1} parent=1 // pred_region
      _
    $region25: #{tpu_custom_call.1} parent=1 // pred_fallthru
      _
    %v24 = vlaneseq
    %v25 = vand.u32 %v24, 127
    %v26 = vld [vmem:[%s0] sm:$0xff]
    %v27 = vld [vmem:[%s1] sm:$0xff]
    %28 = vset.pattern.permute.xlu0 0
    %29 = vperm.xlu0 %28, %v27
    %v30 = vpop.permute.xlu0 %29
    %vm31 = vcmp.eq.s32.totalorder %v25, %v30
    %v32 = vsel %vm31, %v26, 0.0
    %vm33 = vcmask 261120
    %v34 = vsel %vm33, %v32, 0.0
    %35 = vadd.xlane.f32.xlu0 %v34
    %v36 = vpop.xlane.xlu0 %35
    %v37 = vsel %vm33, %v26, -inf
    %38 = vmax.xlane.f32.xlu0 %v37
    %v39 = vpop.xlane.xlu0 %38
    %v40 = vsub.f32 %v26, %v39
    %v41 = vmul.f32 %v40, 1.442695
    %v42 = vpow.pop %v41
    %v43 = vsel %vm33, %v42, 0.0
    %44 = vadd.xlane.f32.xlu0 %v43
    %v45 = vpop.xlane.xlu0 %44
    %v46 = vlog2.pop %v45
    %v47 = vmul.f32 %v46, 0.6931472
    %v48 = vadd.f32 %v39, %v47
    %v49 = vsub.f32 %v48, %v36
    %vm50 = vcmask 7168
    %v51 = vsel %vm50, %v49, 0.0
    %52 = vadd.xlane.f32.xlu0 %v51
    %v53 = vpop.xlane.xlu0 %52
    %v54 = vrot.slane %v53, 4
    %v55 = vadd.f32 %v53, %v54
    %v56 = vrot.slane %v55, 2
    %v57 = vadd.f32 %v55, %v56
    %v58 = vrot.slane %v57, 1
    %v59 = vadd.f32 %v57, %v58
    %s60 = vtos %v59
    %s61 = smul.f32 %s60, 0.5
    %v62 = vld [vmem:[%s2] sm:$0xff]
    %v63 = vld [vmem:[%s3] sm:$0xff]
    %64 = vset.pattern.permute.xlu0 0
    %65 = vperm.xlu0 %64, %v63
    %v66 = vpop.permute.xlu0 %65
    %vm67 = vcmp.eq.s32.totalorder %v25, %v66
    %v68 = vsel %vm67, %v62, 0.0
    %v69 = vsel %vm33, %v68, 0.0
    %70 = vadd.xlane.f32.xlu0 %v69
    %v71 = vpop.xlane.xlu0 %70
    %v72 = vsel %vm33, %v62, -inf
    %73 = vmax.xlane.f32.xlu0 %v72
    %v74 = vpop.xlane.xlu0 %73
    %v75 = vsub.f32 %v62, %v74
    %v76 = vmul.f32 %v75, 1.442695
    %v77 = vpow.pop %v76
    %v78 = vsel %vm33, %v77, 0.0
    %79 = vadd.xlane.f32.xlu0 %v78
    %v80 = vpop.xlane.xlu0 %79
    %v81 = vlog2.pop %v80
    %v82 = vmul.f32 %v81, 0.6931472
    %v83 = vadd.f32 %v74, %v82
    %v84 = vsub.f32 %v83, %v71
    %v85 = vsel %vm50, %v84, 0.0
    %86 = vadd.xlane.f32.xlu0 %v85
    %v87 = vpop.xlane.xlu0 %86
    %v88 = vrot.slane %v87, 4
    %v89 = vadd.f32 %v87, %v88
    %v90 = vrot.slane %v89, 2
    %v91 = vadd.f32 %v89, %v90
    %v92 = vrot.slane %v91, 1
    %v93 = vadd.f32 %v91, %v92
    %s94 = vtos %v93
    %s95 = smul.f32 %s94, 0.25
    %s96 = sadd.f32 %s61, %s95
    %v97 = vld [vmem:[%s4] sm:$0xff]
    %v98 = vld [vmem:[%s5] sm:$0xff]
    %99 = vset.pattern.permute.xlu0 0
    %100 = vperm.xlu0 %99, %v98
    %v101 = vpop.permute.xlu0 %100
    %vm102 = vcmp.eq.s32.totalorder %v25, %v101
    %v103 = vsel %vm102, %v97, 0.0
    %v104 = vsel %vm33, %v103, 0.0
    %105 = vadd.xlane.f32.xlu0 %v104
    %v106 = vpop.xlane.xlu0 %105
    %v107 = vsel %vm33, %v97, -inf
    %108 = vmax.xlane.f32.xlu0 %v107
    %v109 = vpop.xlane.xlu0 %108
    %v110 = vsub.f32 %v97, %v109
    %v111 = vmul.f32 %v110, 1.442695
    %v112 = vpow.pop %v111
    %v113 = vsel %vm33, %v112, 0.0
    %114 = vadd.xlane.f32.xlu0 %v113
    %v115 = vpop.xlane.xlu0 %114
    %v116 = vlog2.pop %v115
    %v117 = vmul.f32 %v116, 0.6931472
    %v118 = vadd.f32 %v109, %v117
    %v119 = vsub.f32 %v118, %v106
    %v120 = vsel %vm50, %v119, 0.0
    %121 = vadd.xlane.f32.xlu0 %v120
    %v122 = vpop.xlane.xlu0 %121
    %v123 = vrot.slane %v122, 4
    %v124 = vadd.f32 %v122, %v123
    %v125 = vrot.slane %v124, 2
    %v126 = vadd.f32 %v124, %v125
    %v127 = vrot.slane %v126, 1
    %v128 = vadd.f32 %v126, %v127
    %s129 = vtos %v128
    %s130 = smul.f32 %s129, 0.25
    %s131 = sadd.f32 %s96, %s130
    %v132 = vstv %s131
    %133 = vst [vmem:[#allocation2] sm:$0x1] %v132
    // Predicated region
    $region26: #{tpu_custom_call.1} parent=1 // pred_check
      _
    $region27: #{tpu_custom_call.1} parent=1 // pred_check_branch
      %135 = sbr.rel (0) target = $region29
    $region28: #{tpu_custom_call.1} parent=1 // pred_region
      %s137 = ssub.s32 16, 16
      %138 = vsyncadd [#allocation3], %s137
      %s140 = sshll.u32 [#allocation2], 4
      %s141 = int_to_ptr.vmem [resolvable:$true] %s140
      %143 = dma.vmem_to_hbm [thread:$0]  %s141, 16, %s6, [#allocation3]
    $region29: #{tpu_custom_call.1} parent=1 // pred_fallthru
      _
    // Predicated region
    $region30: #{tpu_custom_call.1} parent=1 // pred_check
      _
    $region31: #{tpu_custom_call.1} parent=1 // pred_check_branch
      %145 = sbr.rel (0) target = $region33
    $region32: #{tpu_custom_call.1} parent=1 // pred_region
      %146 = dma.done [#allocation3], 16
    $region33: #{tpu_custom_call.1} parent=1 // pred_fallthru
      _
    %147 = vsyncpa [#allocation3], 1

</llo_original>
